<compile_context>
chip_gen: v5e
topology: v5e:2x2
jax: 0.10.0
libtpu: 0.0.40
codegen_flags: <defaults>
</compile_context>

<pallas_src>
import jax
import jax.numpy as jnp
from jax import lax
from jax.experimental import pallas as pl
from jax.experimental.pallas import tpu as pltpu  # noqa: F401


def _net_kernel(idx_ref, eproj_ref, whh_ref, wfcb_ref, out_ref):
    # idx_ref:  (seq*batch, 1) int32   time-major flattened token ids
    # eproj_ref:(vocab, hidden) f32    = emb @ W_ih + (b_ih + b_hh)
    # whh_ref:  (hidden, hidden) bf16
    # wfcb_ref: (hidden+1, wl_pad) f32 rows 0:hidden = W_fc (lane-padded),
    #                                  row  hidden   = b_fc
    # out_ref:  (batch, wl_pad) f32
    seq_batch = idx_ref.shape[0]
    vocab, hidden = eproj_ref.shape
    batch = out_ref.shape[0]
    seq = seq_batch // batch

    # ---- Fused embedding gather + (pre-folded) input projection ----
    # one_hot(idx) @ E_proj_b gives x_t @ W_ih + b for every (t, b) row at once,
    # off the serial critical path of the recurrence.
    idx = idx_ref[...]                                             # (S*B, 1)
    iota = lax.broadcasted_iota(jnp.int32, (seq_batch, vocab), 1)
    one_hot = (iota == idx).astype(jnp.float32)                    # (S*B, vocab)
    p = jnp.dot(one_hot, eproj_ref[...],
                preferred_element_type=jnp.float32)                # (S*B, hidden)

    w_hh = whh_ref[...]                                            # bf16, loaded once (loop-invariant)

    # ---- Serial recurrence, fully unrolled, h carried in vregs ----
    # h0 = 0 => first step is just tanh(p[0]).
    h = jnp.tanh(p[0:batch, :])
    for t in range(1, seq):                                        # static trip count -> unrolled
        rec = jnp.dot(h.astype(jnp.bfloat16), w_hh,
                      preferred_element_type=jnp.float32)          # single-pass bf16 MXU
        h = jnp.tanh(p[t * batch:(t + 1) * batch, :] + rec)        # add + tanh in f32

    # ---- Final Linear on the last hidden state (bias = last packed row) ----
    w_fc = wfcb_ref[0:hidden, :]                                   # (hidden, wl_pad)
    b_fc = wfcb_ref[hidden:hidden + 1, :]                          # (1, wl_pad)
    out_ref[...] = (jnp.dot(h, w_fc, preferred_element_type=jnp.float32)
                    + b_fc).astype(out_ref.dtype)


def net_forward(x_idx, params):
    """x_idx: (batch, seq) int32 token ids. Returns (1, batch, words_len)."""
    emb = params["embedding"]          # (vocab, word_dim)
    w_ih = params["w_ih"]              # (word_dim, hidden)
    w_hh = params["w_hh"]              # (hidden, hidden)
    b = params["b"]                    # (1, hidden)  (= b_ih + b_hh)
    w_fc = params["w_fc"]              # (hidden, words_len)
    b_fc = params["b_fc"]              # (1, words_len)

    batch, seq = x_idx.shape
    vocab, word_dim = emb.shape
    hidden = w_hh.shape[0]
    words_len = w_fc.shape[1]

    # Lane-pad the fc output dimension to a multiple of 128 (full-lane stores).
    wl_pad = max(128, ((words_len + 127) // 128) * 128)

    # ---- Hoisted precompute (could be cached at param-load time) ----
    # One-hot rows sum to 1, so the bias folds directly into the table.
    e_proj_b = (jnp.dot(emb, w_ih, preferred_element_type=jnp.float32)
                + b).astype(jnp.float32)                           # (vocab, hidden)
    w_hh_bf16 = w_hh.astype(jnp.bfloat16)
    # Pack W_fc + b_fc into one lane-padded buffer: rows 0:hidden = W_fc, row hidden = b_fc.
    wfcb = jnp.zeros((hidden + 1, wl_pad), jnp.float32)
    wfcb = wfcb.at[:hidden, :words_len].set(w_fc)
    wfcb = wfcb.at[hidden, :words_len].set(b_fc[0])

    # Time-major flattened ids: row t*batch + b  <->  (timestep t, batch b).
    idx_tm = x_idx.T.reshape(seq * batch, 1).astype(jnp.int32)

    out_pad = pl.pallas_call(
        _net_kernel,
        out_shape=jax.ShapeDtypeStruct((batch, wl_pad), jnp.float32),
        in_specs=[
            pl.BlockSpec((seq * batch, 1), lambda: (0, 0)),
            pl.BlockSpec((vocab, hidden), lambda: (0, 0)),
            pl.BlockSpec((hidden, hidden), lambda: (0, 0)),
            pl.BlockSpec((hidden + 1, wl_pad), lambda: (0, 0)),
        ],
        out_specs=pl.BlockSpec((batch, wl_pad), lambda: (0, 0)),
    )(idx_tm, e_proj_b, w_hh_bf16, wfcb)

    out = out_pad[:, :words_len]
    # PyTorch: state is (num_layers=1, batch, hidden) -> fc -> (1, batch, words_len)
    return out[None, :, :]


def init_params(key, vocab_size, word_dim, hidden_size, words_len):
    k = jax.random.split(key, 6)
    s_rnn = 1.0 / jnp.sqrt(hidden_size)
    s_fc = 1.0 / jnp.sqrt(hidden_size)
    return {
        "embedding": jax.random.normal(k[0], (vocab_size, word_dim), jnp.float32),
        "w_ih": jax.random.uniform(k[1], (word_dim, hidden_size), jnp.float32,
                                   -s_rnn, s_rnn),
        "w_hh": jax.random.uniform(k[2], (hidden_size, hidden_size), jnp.float32,
                                   -s_rnn, s_rnn),
        # b = b_ih + b_hh folded into one bias row
        "b": jax.random.uniform(k[3], (1, hidden_size), jnp.float32,
                                -s_rnn, s_rnn),
        "w_fc": jax.random.uniform(k[4], (hidden_size, words_len), jnp.float32,
                                   -s_fc, s_fc),
        "b_fc": jax.random.uniform(k[5], (1, words_len), jnp.float32,
                                   -s_fc, s_fc),
    }


if __name__ == "__main__":
    vocab_size = 50
    word_dim = 16
    hidden_size = 32
    words_len = 50
    batch = 2
    seq = 8

    key = jax.random.PRNGKey(0)
    kp, kx = jax.random.split(key)
    params = init_params(kp, vocab_size, word_dim, hidden_size, words_len)
    x_idx = jax.random.randint(kx, (batch, seq), 0, vocab_size, dtype=jnp.int32)

    out = net_forward(x_idx, params)
    jax.block_until_ready(out)
    assert out.shape == (1, batch, words_len), out.shape
    assert bool(jnp.all(jnp.isfinite(out)))
    print("KERNEL_OK")
</pallas_src>

<mosaic_0001>
module attributes {stable_mosaic.version = 11 : i64} {
  func.func @_net_kernel(%arg0: memref<16x1xi32, #tpu.memory_space<vmem>>, %arg1: memref<50x32xf32, #tpu.memory_space<vmem>>, %arg2: memref<32x32xbf16, #tpu.memory_space<vmem>>, %arg3: memref<33x128xf32, #tpu.memory_space<vmem>>, %arg4: memref<2x128xf32, #tpu.memory_space<vmem>>) attributes {dimension_semantics = [], scalar_prefetch = 0 : i64, scratch_operands = 0 : i64, tpu.core_type = #tpu.core_type<tc>} {
    %c0 = arith.constant 0 : index
    %c0_0 = arith.constant 0 : index
    %0 = vector.load %arg0[%c0, %c0_0] : memref<16x1xi32, #tpu.memory_space<vmem>>, vector<16x1xi32>
    %1 = tpu.iota {dimensions = array<i32: 1>} : vector<16x50xi32>
    %2 = vector.broadcast %0 : vector<16x1xi32> to vector<16x50xi32>
    %3 = arith.cmpi eq, %1, %2 : vector<16x50xi32>
    %4 = arith.extui %3 : vector<16x50xi1> to vector<16x50xi32>
    %5 = arith.sitofp %4 : vector<16x50xi32> to vector<16x50xf32>
    %c0_1 = arith.constant 0 : index
    %c0_2 = arith.constant 0 : index
    %6 = vector.load %arg1[%c0_1, %c0_2] : memref<50x32xf32, #tpu.memory_space<vmem>>, vector<50x32xf32>
    %cst = arith.constant dense<0.000000e+00> : vector<16x32xf32>
    %7 = tpu.matmul %5, %6, %cst {dimension_numbers = #tpu.dot_dimension_numbers<[1], [0], [0], [1], [0, 0, 1, 1], [], []>} : vector<16x50xf32>, vector<50x32xf32>, vector<16x32xf32> -> vector<16x32xf32>
    %c0_3 = arith.constant 0 : index
    %c0_4 = arith.constant 0 : index
    %8 = vector.load %arg2[%c0_3, %c0_4] : memref<32x32xbf16, #tpu.memory_space<vmem>>, vector<32x32xbf16>
    %9 = vector.extract_strided_slice %7 {offsets = [0, 0], sizes = [2, 32], strides = [1, 1]} : vector<16x32xf32> to vector<2x32xf32>
    %10 = math.tanh %9 : vector<2x32xf32>
    %11 = arith.truncf %10 : vector<2x32xf32> to vector<2x32xbf16>
    %cst_5 = arith.constant dense<0.000000e+00> : vector<2x32xf32>
    %12 = tpu.matmul %11, %8, %cst_5 {dimension_numbers = #tpu.dot_dimension_numbers<[1], [0], [0], [1], [0, 0, 1, 1], [], []>} : vector<2x32xbf16>, vector<32x32xbf16>, vector<2x32xf32> -> vector<2x32xf32>
    %13 = vector.extract_strided_slice %7 {offsets = [2, 0], sizes = [2, 32], strides = [1, 1]} : vector<16x32xf32> to vector<2x32xf32>
    %14 = arith.addf %13, %12 : vector<2x32xf32>
    %15 = math.tanh %14 : vector<2x32xf32>
    %16 = arith.truncf %15 : vector<2x32xf32> to vector<2x32xbf16>
    %cst_6 = arith.constant dense<0.000000e+00> : vector<2x32xf32>
    %17 = tpu.matmul %16, %8, %cst_6 {dimension_numbers = #tpu.dot_dimension_numbers<[1], [0], [0], [1], [0, 0, 1, 1], [], []>} : vector<2x32xbf16>, vector<32x32xbf16>, vector<2x32xf32> -> vector<2x32xf32>
    %18 = vector.extract_strided_slice %7 {offsets = [4, 0], sizes = [2, 32], strides = [1, 1]} : vector<16x32xf32> to vector<2x32xf32>
    %19 = arith.addf %18, %17 : vector<2x32xf32>
    %20 = math.tanh %19 : vector<2x32xf32>
    %21 = arith.truncf %20 : vector<2x32xf32> to vector<2x32xbf16>
    %cst_7 = arith.constant dense<0.000000e+00> : vector<2x32xf32>
    %22 = tpu.matmul %21, %8, %cst_7 {dimension_numbers = #tpu.dot_dimension_numbers<[1], [0], [0], [1], [0, 0, 1, 1], [], []>} : vector<2x32xbf16>, vector<32x32xbf16>, vector<2x32xf32> -> vector<2x32xf32>
    %23 = vector.extract_strided_slice %7 {offsets = [6, 0], sizes = [2, 32], strides = [1, 1]} : vector<16x32xf32> to vector<2x32xf32>
    %24 = arith.addf %23, %22 : vector<2x32xf32>
    %25 = math.tanh %24 : vector<2x32xf32>
    %26 = arith.truncf %25 : vector<2x32xf32> to vector<2x32xbf16>
    %cst_8 = arith.constant dense<0.000000e+00> : vector<2x32xf32>
    %27 = tpu.matmul %26, %8, %cst_8 {dimension_numbers = #tpu.dot_dimension_numbers<[1], [0], [0], [1], [0, 0, 1, 1], [], []>} : vector<2x32xbf16>, vector<32x32xbf16>, vector<2x32xf32> -> vector<2x32xf32>
    %28 = vector.extract_strided_slice %7 {offsets = [8, 0], sizes = [2, 32], strides = [1, 1]} : vector<16x32xf32> to vector<2x32xf32>
    %29 = arith.addf %28, %27 : vector<2x32xf32>
    %30 = math.tanh %29 : vector<2x32xf32>
    %31 = arith.truncf %30 : vector<2x32xf32> to vector<2x32xbf16>
    %cst_9 = arith.constant dense<0.000000e+00> : vector<2x32xf32>
    %32 = tpu.matmul %31, %8, %cst_9 {dimension_numbers = #tpu.dot_dimension_numbers<[1], [0], [0], [1], [0, 0, 1, 1], [], []>} : vector<2x32xbf16>, vector<32x32xbf16>, vector<2x32xf32> -> vector<2x32xf32>
    %33 = vector.extract_strided_slice %7 {offsets = [10, 0], sizes = [2, 32], strides = [1, 1]} : vector<16x32xf32> to vector<2x32xf32>
    %34 = arith.addf %33, %32 : vector<2x32xf32>
    %35 = math.tanh %34 : vector<2x32xf32>
    %36 = arith.truncf %35 : vector<2x32xf32> to vector<2x32xbf16>
    %cst_10 = arith.constant dense<0.000000e+00> : vector<2x32xf32>
    %37 = tpu.matmul %36, %8, %cst_10 {dimension_numbers = #tpu.dot_dimension_numbers<[1], [0], [0], [1], [0, 0, 1, 1], [], []>} : vector<2x32xbf16>, vector<32x32xbf16>, vector<2x32xf32> -> vector<2x32xf32>
    %38 = vector.extract_strided_slice %7 {offsets = [12, 0], sizes = [2, 32], strides = [1, 1]} : vector<16x32xf32> to vector<2x32xf32>
    %39 = arith.addf %38, %37 : vector<2x32xf32>
    %40 = math.tanh %39 : vector<2x32xf32>
    %41 = arith.truncf %40 : vector<2x32xf32> to vector<2x32xbf16>
    %cst_11 = arith.constant dense<0.000000e+00> : vector<2x32xf32>
    %42 = tpu.matmul %41, %8, %cst_11 {dimension_numbers = #tpu.dot_dimension_numbers<[1], [0], [0], [1], [0, 0, 1, 1], [], []>} : vector<2x32xbf16>, vector<32x32xbf16>, vector<2x32xf32> -> vector<2x32xf32>
    %43 = vector.extract_strided_slice %7 {offsets = [14, 0], sizes = [2, 32], strides = [1, 1]} : vector<16x32xf32> to vector<2x32xf32>
    %44 = arith.addf %43, %42 : vector<2x32xf32>
    %45 = math.tanh %44 : vector<2x32xf32>
    %c0_12 = arith.constant 0 : index
    %c0_13 = arith.constant 0 : index
    %46 = vector.load %arg3[%c0_12, %c0_13] : memref<33x128xf32, #tpu.memory_space<vmem>>, vector<32x128xf32>
    %c32 = arith.constant 32 : index
    %c0_14 = arith.constant 0 : index
    %47 = vector.load %arg3[%c32, %c0_14] : memref<33x128xf32, #tpu.memory_space<vmem>>, vector<1x128xf32>
    %cst_15 = arith.constant dense<0.000000e+00> : vector<2x128xf32>
    %48 = tpu.matmul %45, %46, %cst_15 {dimension_numbers = #tpu.dot_dimension_numbers<[1], [0], [0], [1], [0, 0, 1, 1], [], []>} : vector<2x32xf32>, vector<32x128xf32>, vector<2x128xf32> -> vector<2x128xf32>
    %49 = vector.broadcast %47 : vector<1x128xf32> to vector<2x128xf32>
    %50 = arith.addf %48, %49 : vector<2x128xf32>
    %c0_16 = arith.constant 0 : index
    %c0_17 = arith.constant 0 : index
    %51 = vector.load %arg4[%c0_16, %c0_17] : memref<2x128xf32, #tpu.memory_space<vmem>>, vector<2x128xf32>
    tpu.vector_store %arg4[%c0_16, %c0_17], %50 {strides = array<i32>} : memref<2x128xf32, #tpu.memory_space<vmem>>, vector<2x128xf32>,
    return
  }
}

</mosaic_0001>

<llo_original>
// kernel: tpu_custom_call.1
$region0: #{tpu_custom_call.1}
  #allocation0 [shape = 'u32[]', space=smem, size = 0x4, offset = 0x4, fixed_abs, tag = 'smem constant byte address 0x4 - core index']
  #allocation1 [shape = 'u32[72,128]{1,0:T(1,128)}', space=vmem, size = 0x9000, scoped, tag = 'internal scratch']
  %s0 = inlined_call_operand.vmem [shape: s32[16,1], index: 0, kind: input, shape index: {}]
  %s1 = inlined_call_operand.vmem [shape: f32[50,32], index: 1, kind: input, shape index: {}]
  %s2 = inlined_call_operand.vmem [shape: bf16[32,32], index: 2, kind: input, shape index: {}]
  %s3 = inlined_call_operand.vmem [shape: f32[33,128], index: 3, kind: input, shape index: {}]
  %s4 = inlined_call_operand.hbm [shape: f32[2,128], index: 4, kind: output, shape index: {}]
  %s5 = sld [smem:[#allocation0]]
  $region26: #{tpu_custom_call.1} parent=0
    _
  %s7 = ssub.s32 1, %s5
  %s8 = scalar_select 0, %s7, %s5
  $region1: #{tpu_custom_call.1} parent=0
    #allocation2 [shape = 'u8[1024]{0}', space=vmem, size = 0x400, scoped, tag = 'output window, operand 0, single buffered']
    #allocation3 [shape = 's32[1]{0}', space=sflag, size = 0x4, scoped, tag = 'scoped memory for tpu_custom_call.1']
    %9 = vsyncpa [#allocation3], 0
    // Predicated region
    $region2: #{tpu_custom_call.1} parent=1 // pred_check
      _
    $region3: #{tpu_custom_call.1} parent=1 // pred_check_branch
      %11 = sbr.rel (0) target = $region5
    $region4: #{tpu_custom_call.1} parent=1 // pred_region
      _
    $region5: #{tpu_custom_call.1} parent=1 // pred_fallthru
      _
    // Predicated region
    $region6: #{tpu_custom_call.1} parent=1 // pred_check
      _
    $region7: #{tpu_custom_call.1} parent=1 // pred_check_branch
      %13 = sbr.rel (0) target = $region9
    $region8: #{tpu_custom_call.1} parent=1 // pred_region
      _
    $region9: #{tpu_custom_call.1} parent=1 // pred_fallthru
      _
    // Predicated region
    $region10: #{tpu_custom_call.1} parent=1 // pred_check
      _
    $region11: #{tpu_custom_call.1} parent=1 // pred_check_branch
      %15 = sbr.rel (0) target = $region13
    $region12: #{tpu_custom_call.1} parent=1 // pred_region
      _
    $region13: #{tpu_custom_call.1} parent=1 // pred_fallthru
      _
    // Predicated region
    $region14: #{tpu_custom_call.1} parent=1 // pred_check
      _
    $region15: #{tpu_custom_call.1} parent=1 // pred_check_branch
      %17 = sbr.rel (0) target = $region17
    $region16: #{tpu_custom_call.1} parent=1 // pred_region
      _
    $region17: #{tpu_custom_call.1} parent=1 // pred_fallthru
      _
    %v19 = vld [vmem:[%s0] sm:$0xff]
    %v20 = vld [vmem:[%s0 + $0x8] sm:$0xff]
    %v21 = vlaneseq
    %v22 = vand.u32 %v21, 127
    %23 = vset.pattern.permute.xlu0 0
    %24 = vperm.xlu0 %23, %v19
    %v25 = vpop.permute.xlu0 %24
    %26 = vset.pattern.permute.xlu0 0
    %27 = vperm.xlu0 %26, %v20
    %v28 = vpop.permute.xlu0 %27
    %vm29 = vcmp.eq.s32.totalorder %v22, %v25
    %vm30 = vcmp.eq.s32.totalorder %v22, %v28
    %v31 = vsel %vm29, 1, 0
    %v32 = vsel %vm30, 1, 0
    %v33 = vcvt.s32.f32 %v31
    %v34 = vcvt.s32.f32 %v32
    %v35 = vld [vmem:[%s1] sm:$0xff]
    %v36 = vld [vmem:[%s1 + $0x8] sm:$0xff]
    %v37 = vld [vmem:[%s1 + $0x10] sm:$0xff]
    %v38 = vld [vmem:[%s1 + $0x18] sm:$0xff]
    %v39 = vld [vmem:[%s1 + $0x20] sm:$0xff]
    %v40 = vld [vmem:[%s1 + $0x28] sm:$0xff]
    %v41 = vld [vmem:[%s1 + $0x30] sm:$0x3]
    %vm42 = vcmask 408576
    %v44 = vsel %vm42, %v33, 0
    %v47 = vsel %vm42, %v34, 0
    %vm49 = vcmask 1041408
    %v51 = vsel %vm49, %v41, 0
    %53 = vmatpush.msra.mxu0 0.0
    %54 = vmatpush.msra.mxu0 0.0
    %55 = vmatpush.msra.mxu0 0.0
    %56 = vmatpush.msra.mxu0 0.0
    %57 = vmatpush.msra.mxu0 0.0
    %58 = vmatpush.msra.mxu0 0.0
    %59 = vmatpush.msra.mxu0 0.0
    %60 = vmatpush.msra.mxu0 0.0
    %61 = vmatpush.msra.mxu0 0.0
    %62 = vmatpush.msra.mxu0 %v51
    %63 = vmatpush.msra.mxu0 %v40
    %64 = vmatpush.msra.mxu0 %v39
    %65 = vmatpush.msra.mxu0 %v38
    %66 = vmatpush.msra.mxu0 %v37
    %67 = vmatpush.msra.mxu0 %v36
    %68 = vmatpush.msra.mxu0 %v35
    %69 = vmatmul.f32.gmra.mxu0 %v44
    %v70 = vpop.f32.mrf.mxu0
    %v71 = vadd.f32 0.0, %v70
    %72 = vmatmul.f32.gmra.mxu0 %v47
    %v73 = vpop.f32.mrf.mxu0
    %v74 = vadd.f32 0.0, %v73
    %75 = vdwg.mxu0
    %v76 = vld [vmem:[%s2] sm:$0xf]
    %v77 = vld [vmem:[%s2 + $0x4] sm:$0xf]
    %v78 = vld [vmem:[%s2 + $0x8] sm:$0xf]
    %v79 = vld [vmem:[%s2 + $0xc] sm:$0xf]
    %v80 = vtanh.pop %v71
    %v81 = vpack.c.bf16 %v80, %v80
    %v86 = vunpack.c.l.b16 %v76
    %v87 = vunpack.c.l.b16 %v77
    %v88 = vunpack.c.l.b16 %v78
    %v89 = vunpack.c.l.b16 %v79
    %v90 = vpack.c.b16 %v87, %v86
    %v91 = vpack.c.b16 %v89, %v88
    %vm94 = vcmask 261120
    %v96 = vsel %vm94, %v81, 0
    %98 = vmatpush.bf16.msra.mxu0 0
    %99 = vmatpush.bf16.msra.mxu0 0
    %100 = vmatpush.bf16.msra.mxu0 0
    %101 = vmatpush.bf16.msra.mxu0 0
    %102 = vmatpush.bf16.msra.mxu0 0
    %103 = vmatpush.bf16.msra.mxu0 0
    %104 = vmatpush.bf16.msra.mxu0 %v91
    %105 = vmatpush.bf16.msra.mxu0 %v90
    %106 = vmatmul.bf16.gmra.mxu0 %v96
    %v107 = vpop.f32.mrf.mxu0
    %v108 = vadd.f32 0.0, %v107
    %v109 = vpop.f32.mrf.mxu0
    %110 = vdwg.mxu0
    %v112 = vrot.slane %v108, 6
    %v114 = vadd.f32 %v71, %v112
    %v115 = vtanh.pop %v114
    %v116 = vpack.c.bf16 %v115, %v115
    %v118 = vrot.slane %v116, 1
    %v120 = vsel %vm94, %v118, 0
    %122 = vmatpush.bf16.msra.mxu0 0
    %123 = vmatpush.bf16.msra.mxu0 0
    %124 = vmatpush.bf16.msra.mxu0 0
    %125 = vmatpush.bf16.msra.mxu0 0
    %126 = vmatpush.bf16.msra.mxu0 0
    %127 = vmatpush.bf16.msra.mxu0 0
    %128 = vmatpush.bf16.msra.mxu0 %v91
    %129 = vmatpush.bf16.msra.mxu0 %v90
    %130 = vmatmul.bf16.gmra.mxu0 %v120
    %v131 = vpop.f32.mrf.mxu0
    %v132 = vadd.f32 0.0, %v131
    %v133 = vpop.f32.mrf.mxu0
    %134 = vdwg.mxu0
    %v136 = vrot.slane %v132, 4
    %v138 = vadd.f32 %v71, %v136
    %v139 = vtanh.pop %v138
    %v140 = vpack.c.bf16 %v139, %v139
    %v142 = vrot.slane %v140, 2
    %v144 = vsel %vm94, %v142, 0
    %146 = vmatpush.bf16.msra.mxu0 0
    %147 = vmatpush.bf16.msra.mxu0 0
    %148 = vmatpush.bf16.msra.mxu0 0
    %149 = vmatpush.bf16.msra.mxu0 0
    %150 = vmatpush.bf16.msra.mxu0 0
    %151 = vmatpush.bf16.msra.mxu0 0
    %152 = vmatpush.bf16.msra.mxu0 %v91
    %153 = vmatpush.bf16.msra.mxu0 %v90
    %154 = vmatmul.bf16.gmra.mxu0 %v144
    %v155 = vpop.f32.mrf.mxu0
    %v156 = vadd.f32 0.0, %v155
    %v157 = vpop.f32.mrf.mxu0
    %158 = vdwg.mxu0
    %v160 = vrot.slane %v156, 2
    %v162 = vadd.f32 %v71, %v160
    %v163 = vtanh.pop %v162
    %v164 = vpack.c.bf16 %v163, %v163
    %v166 = vrot.slane %v164, 3
    %v168 = vsel %vm94, %v166, 0
    %170 = vmatpush.bf16.msra.mxu0 0
    %171 = vmatpush.bf16.msra.mxu0 0
    %172 = vmatpush.bf16.msra.mxu0 0
    %173 = vmatpush.bf16.msra.mxu0 0
    %174 = vmatpush.bf16.msra.mxu0 0
    %175 = vmatpush.bf16.msra.mxu0 0
    %176 = vmatpush.bf16.msra.mxu0 %v91
    %177 = vmatpush.bf16.msra.mxu0 %v90
    %178 = vmatmul.bf16.gmra.mxu0 %v168
    %v179 = vpop.f32.mrf.mxu0
    %v180 = vadd.f32 0.0, %v179
    %v181 = vpop.f32.mrf.mxu0
    %182 = vdwg.mxu0
    %v183 = vadd.f32 %v74, %v180
    %v184 = vtanh.pop %v183
    %v185 = vpack.c.bf16 %v184, %v184
    %v187 = vsel %vm94, %v185, 0
    %189 = vmatpush.bf16.msra.mxu0 0
    %190 = vmatpush.bf16.msra.mxu0 0
    %191 = vmatpush.bf16.msra.mxu0 0
    %192 = vmatpush.bf16.msra.mxu0 0
    %193 = vmatpush.bf16.msra.mxu0 0
    %194 = vmatpush.bf16.msra.mxu0 0
    %195 = vmatpush.bf16.msra.mxu0 %v91
    %196 = vmatpush.bf16.msra.mxu0 %v90
    %197 = vmatmul.bf16.gmra.mxu0 %v187
    %v198 = vpop.f32.mrf.mxu0
    %v199 = vadd.f32 0.0, %v198
    %v200 = vpop.f32.mrf.mxu0
    %201 = vdwg.mxu0
    %v203 = vrot.slane %v199, 6
    %v205 = vadd.f32 %v74, %v203
    %v206 = vtanh.pop %v205
    %v207 = vpack.c.bf16 %v206, %v206
    %v209 = vrot.slane %v207, 1
    %v211 = vsel %vm94, %v209, 0
    %213 = vmatpush.bf16.msra.mxu0 0
    %214 = vmatpush.bf16.msra.mxu0 0
    %215 = vmatpush.bf16.msra.mxu0 0
    %216 = vmatpush.bf16.msra.mxu0 0
    %217 = vmatpush.bf16.msra.mxu0 0
    %218 = vmatpush.bf16.msra.mxu0 0
    %219 = vmatpush.bf16.msra.mxu0 %v91
    %220 = vmatpush.bf16.msra.mxu0 %v90
    %221 = vmatmul.bf16.gmra.mxu0 %v211
    %v222 = vpop.f32.mrf.mxu0
    %v223 = vadd.f32 0.0, %v222
    %v224 = vpop.f32.mrf.mxu0
    %225 = vdwg.mxu0
    %v227 = vrot.slane %v223, 4
    %v229 = vadd.f32 %v74, %v227
    %v230 = vtanh.pop %v229
    %v231 = vpack.c.bf16 %v230, %v230
    %v233 = vrot.slane %v231, 2
    %v235 = vsel %vm94, %v233, 0
    %237 = vmatpush.bf16.msra.mxu0 0
    %238 = vmatpush.bf16.msra.mxu0 0
    %239 = vmatpush.bf16.msra.mxu0 0
    %240 = vmatpush.bf16.msra.mxu0 0
    %241 = vmatpush.bf16.msra.mxu0 0
    %242 = vmatpush.bf16.msra.mxu0 0
    %243 = vmatpush.bf16.msra.mxu0 %v91
    %244 = vmatpush.bf16.msra.mxu0 %v90
    %245 = vmatmul.bf16.gmra.mxu0 %v235
    %v246 = vpop.f32.mrf.mxu0
    %v247 = vadd.f32 0.0, %v246
    %v248 = vpop.f32.mrf.mxu0
    %249 = vdwg.mxu0
    %v251 = vrot.slane %v247, 2
    %v253 = vadd.f32 %v74, %v251
    %v254 = vtanh.pop %v253
    %v255 = vld [vmem:[%s3] sm:$0xff]
    %v256 = vld [vmem:[%s3 + $0x8] sm:$0xff]
    %v257 = vld [vmem:[%s3 + $0x10] sm:$0xff]
    %v258 = vld [vmem:[%s3 + $0x18] sm:$0xff]
    %v259 = vld [vmem:[%s3 + $0x20] sm:$0x1]
    %v260 = vperm.slane %v259, 0
    %v262 = vrot.slane %v254, 6
    %v263 = vsel %vm94, %v262, 0
    %265 = vmatpush.msra.mxu0 0.0
    %266 = vmatpush.msra.mxu0 0.0
    %267 = vmatpush.msra.mxu0 0.0
    %268 = vmatpush.msra.mxu0 0.0
    %269 = vmatpush.msra.mxu0 0.0
    %270 = vmatpush.msra.mxu0 0.0
    %271 = vmatpush.msra.mxu0 0.0
    %272 = vmatpush.msra.mxu0 0.0
    %273 = vmatpush.msra.mxu0 0.0
    %274 = vmatpush.msra.mxu0 0.0
    %275 = vmatpush.msra.mxu0 0.0
    %276 = vmatpush.msra.mxu0 0.0
    %277 = vmatpush.msra.mxu0 %v258
    %278 = vmatpush.msra.mxu0 %v257
    %279 = vmatpush.msra.mxu0 %v256
    %280 = vmatpush.msra.mxu0 %v255
    %281 = vmatmul.f32.gmra.mxu0 %v263
    %v282 = vpop.f32.mrf.mxu0
    %v283 = vadd.f32 %v260, %v282
    %284 = vdwg.mxu0
    %285 = vst [vmem:[#allocation2] sm:$0x3] %v283
    // Predicated region
    $region18: #{tpu_custom_call.1} parent=1 // pred_check
      _
    $region19: #{tpu_custom_call.1} parent=1 // pred_check_branch
      %287 = sbr.rel (0) target = $region21
    $region20: #{tpu_custom_call.1} parent=1 // pred_region
      %289 = vsyncadd [#allocation3], 0
      %s291 = sshll.u32 [#allocation2], 4
      %s292 = int_to_ptr.vmem [resolvable:$true] %s291
      %s293 = sshll.u32 %s4, 4
      %s294 = int_to_ptr.hbm [resolvable:$true] %s293
      %296 = dma.vmem_to_hbm [thread:$0]  %s292, 32, %s294, [#allocation3]
    $region21: #{tpu_custom_call.1} parent=1 // pred_fallthru
      _
    // Predicated region
    $region22: #{tpu_custom_call.1} parent=1 // pred_check
      _
    $region23: #{tpu_custom_call.1} parent=1 // pred_check_branch
      %298 = sbr.rel (0) target = $region25
    $region24: #{tpu_custom_call.1} parent=1 // pred_region
      %300 = dma.done [#allocation3], 32
    $region25: #{tpu_custom_call.1} parent=1 // pred_fallthru
      _
    %301 = vsyncpa [#allocation3], 1

</llo_original>
